<compile_context>
chip_gen: v5e
topology: v5e:2x2
jax: 0.10.0
libtpu: 0.0.40
codegen_flags: <defaults>
</compile_context>

<pallas_src>
import functools
import math

import jax
import jax.numpy as jnp
from jax.experimental import pallas as pl
from jax.experimental.pallas import tpu as pltpu


# ----------------------------- kernel -------------------------------------- #

def self_attention_kernel(h_ref, wqkv_ref, o_ref, *, n_pad):
    """h_ref: (B, Hin) bf16; wqkv_ref: (Hin, 3*n_pad) bf16; o_ref: (B, n_pad) f32.

    wqkv is [wq_scaled | wk | wv], each head zero-padded to n_pad lanes
    (n_pad is a multiple of 128, so every slice below is lane-aligned).
    The 1/sqrt(dk) attention scale is pre-folded into the wq block.
    """
    h = h_ref[...]                                               # (B, Hin) bf16

    # Fused Q/K/V projection: one bf16 MXU matmul, f32 accumulation.
    qkv = jnp.dot(h, wqkv_ref[...], preferred_element_type=jnp.float32)

    q = qkv[:, :n_pad]               # (B, n_pad) f32, already * 1/sqrt(dk)
    k = qkv[:, n_pad:2 * n_pad]      # (B, n_pad) f32
    v = qkv[:, 2 * n_pad:]           # (B, n_pad) f32 (padded cols are zero)

    # z = (q/sqrt(dk)) @ k.T  -> (B, B); zero-padded lanes contribute nothing.
    # Tiny matmul, keep operands in f32 for accuracy.
    z = jax.lax.dot_general(q, k, (((1,), (1,)), ((), ())),
                            preferred_element_type=jnp.float32)

    # softmax over dim=1 (rows), matching F.softmax(z, dim=1); all f32,
    # exact division (only B denominators -> approx reciprocal buys nothing).
    z_max = jnp.max(z, axis=1, keepdims=True)
    e = jnp.exp(z - z_max)
    denom = jnp.sum(e, axis=1, keepdims=True)
    beta = e / denom

    # st = beta @ v -> (B, n_pad); bf16 operands, f32 accumulation,
    # lane-dense (n_pad multiple of 128) full-tile store.
    o_ref[...] = jnp.dot(beta.astype(jnp.bfloat16), v.astype(jnp.bfloat16),
                         preferred_element_type=jnp.float32)


# ----------------------------- wrappers ------------------------------------ #

def prepare_qkv_weight(wq, wk, wv, dk):
    """One-time host-side prep.

    wq/wk/wv are nn.Linear weights of shape (hidden, last_hidden).
    Returns (wqkv_bf16, n_pad): wqkv has shape (last_hidden, 3*n_pad) with the
    1/sqrt(dk) attention scale folded into the wq block (in f32, before the
    bf16 cast) and every head zero-padded to a multiple of 128 lanes.
    """
    h_out, _ = wq.shape
    n_pad = ((h_out + 127) // 128) * 128
    scale = 1.0 / math.sqrt(dk)

    def pad_t(w, s=1.0):
        wt = (w.astype(jnp.float32) * s).T                 # (Hin, Hout) f32
        return jnp.pad(wt, ((0, 0), (0, n_pad - h_out)))   # (Hin, n_pad)

    wqkv_f32 = jnp.concatenate([pad_t(wq, scale), pad_t(wk), pad_t(wv)], axis=1)
    return wqkv_f32.astype(jnp.bfloat16), n_pad


def self_attention(h, wqkv, n_pad, hidden_size):
    """h: (B, last_hidden) f32 -> st: (B, hidden_size) f32."""
    B = h.shape[0]
    kernel = functools.partial(self_attention_kernel, n_pad=n_pad)
    out_padded = pl.pallas_call(
        kernel,
        in_specs=[pl.BlockSpec(memory_space=pltpu.MemorySpace.VMEM),
                  pl.BlockSpec(memory_space=pltpu.MemorySpace.VMEM)],
        out_specs=pl.BlockSpec(memory_space=pltpu.MemorySpace.VMEM),
        out_shape=jax.ShapeDtypeStruct((B, n_pad), jnp.float32),
    )(h.astype(jnp.bfloat16), wqkv)
    # Padded columns are exactly zero (zero weight columns); drop them here.
    return out_padded[:, :hidden_size]


def self_attention_reference(h, wq, wk, wv):
    """Pure-JAX f32 reference matching the PyTorch module."""
    q = h @ wq.T
    k = h @ wk.T
    v = h @ wv.T
    z = (q @ k.T) / math.sqrt(q.shape[-1])
    beta = jax.nn.softmax(z, axis=1)
    return beta @ v


# ------------------------------- main --------------------------------------- #

if __name__ == "__main__":
    B = 8
    last_hidden = 180          # e.g. 9 channels * length 20 from the LeNet trunk
    hidden = 180

    key = jax.random.PRNGKey(0)
    k0, k1, k2, k3 = jax.random.split(key, 4)
    h = jax.random.normal(k0, (B, last_hidden), jnp.float32)

    bound = 1.0 / math.sqrt(last_hidden)
    wq = jax.random.uniform(k1, (hidden, last_hidden), jnp.float32, -bound, bound)
    wk = jax.random.uniform(k2, (hidden, last_hidden), jnp.float32, -bound, bound)
    wv = jax.random.uniform(k3, (hidden, last_hidden), jnp.float32, -bound, bound)

    # One-time parameter prep (fold scale in f32, fuse + pad heads, cast bf16).
    wqkv, n_pad = prepare_qkv_weight(wq, wk, wv, dk=hidden)

    out = self_attention(h, wqkv, n_pad, hidden)
    jax.block_until_ready(out)
    assert out.shape == (B, hidden)

    ref = self_attention_reference(h, wq, wk, wv)
    # Tolerance reflects bf16 matmul operands (f32 accumulation); softmax
    # itself is exact f32.
    assert jnp.allclose(out, ref, atol=5e-2, rtol=5e-2), \
        float(jnp.max(jnp.abs(out - ref)))

    print("KERNEL_OK")
</pallas_src>

<mosaic_0001>
module attributes {stable_mosaic.version = 11 : i64} {
  func.func @self_attention_kernel(%arg0: memref<8x180xbf16, #tpu.memory_space<vmem>>, %arg1: memref<180x768xbf16, #tpu.memory_space<vmem>>, %arg2: memref<8x256xf32, #tpu.memory_space<vmem>>) attributes {dimension_semantics = [], scalar_prefetch = 0 : i64, scratch_operands = 0 : i64, tpu.core_type = #tpu.core_type<tc>} {
    %c0 = arith.constant 0 : index
    %c0_0 = arith.constant 0 : index
    %0 = vector.load %arg0[%c0, %c0_0] : memref<8x180xbf16, #tpu.memory_space<vmem>>, vector<8x180xbf16>
    %c0_1 = arith.constant 0 : index
    %c0_2 = arith.constant 0 : index
    %1 = vector.load %arg1[%c0_1, %c0_2] : memref<180x768xbf16, #tpu.memory_space<vmem>>, vector<180x768xbf16>
    %cst = arith.constant dense<0.000000e+00> : vector<8x768xf32>
    %2 = tpu.matmul %0, %1, %cst {dimension_numbers = #tpu.dot_dimension_numbers<[1], [0], [0], [1], [0, 0, 1, 1], [], []>} : vector<8x180xbf16>, vector<180x768xbf16>, vector<8x768xf32> -> vector<8x768xf32>
    %3 = vector.extract_strided_slice %2 {offsets = [0, 0], sizes = [8, 256], strides = [1, 1]} : vector<8x768xf32> to vector<8x256xf32>
    %4 = vector.extract_strided_slice %2 {offsets = [0, 256], sizes = [8, 256], strides = [1, 1]} : vector<8x768xf32> to vector<8x256xf32>
    %5 = vector.extract_strided_slice %2 {offsets = [0, 512], sizes = [8, 256], strides = [1, 1]} : vector<8x768xf32> to vector<8x256xf32>
    %cst_3 = arith.constant dense<0.000000e+00> : vector<8x8xf32>
    %6 = tpu.matmul %3, %4, %cst_3 {dimension_numbers = #tpu.dot_dimension_numbers<[1], [1], [0], [0], [0, 0, 1, 0], [], []>} : vector<8x256xf32>, vector<8x256xf32>, vector<8x8xf32> -> vector<8x8xf32>
    %cst_4 = arith.constant dense<0xFF800000> : vector<8xf32>
    %7 = vector.multi_reduction <maximumf>, %6, %cst_4 [1] : vector<8x8xf32> to vector<8xf32>
    %8 = vector.shape_cast %7 : vector<8xf32> to vector<8x1xf32>
    %9 = vector.broadcast %8 : vector<8x1xf32> to vector<8x8xf32>
    %10 = arith.subf %6, %9 : vector<8x8xf32>
    %11 = math.exp %10 : vector<8x8xf32>
    %cst_5 = arith.constant dense<0.000000e+00> : vector<8xf32>
    %12 = vector.multi_reduction <add>, %11, %cst_5 [1] : vector<8x8xf32> to vector<8xf32>
    %13 = vector.shape_cast %12 : vector<8xf32> to vector<8x1xf32>
    %14 = vector.broadcast %13 : vector<8x1xf32> to vector<8x8xf32>
    %15 = arith.divf %11, %14 : vector<8x8xf32>
    %16 = arith.truncf %15 : vector<8x8xf32> to vector<8x8xbf16>
    %17 = arith.truncf %5 : vector<8x256xf32> to vector<8x256xbf16>
    %cst_6 = arith.constant dense<0.000000e+00> : vector<8x256xf32>
    %18 = tpu.matmul %16, %17, %cst_6 {dimension_numbers = #tpu.dot_dimension_numbers<[1], [0], [0], [1], [0, 0, 1, 1], [], []>} : vector<8x8xbf16>, vector<8x256xbf16>, vector<8x256xf32> -> vector<8x256xf32>
    %c0_7 = arith.constant 0 : index
    %c0_8 = arith.constant 0 : index
    %19 = vector.load %arg2[%c0_7, %c0_8] : memref<8x256xf32, #tpu.memory_space<vmem>>, vector<8x256xf32>
    tpu.vector_store %arg2[%c0_7, %c0_8], %18 {strides = array<i32>} : memref<8x256xf32, #tpu.memory_space<vmem>>, vector<8x256xf32>,
    return
  }
}

</mosaic_0001>

<llo_original>
// kernel: tpu_custom_call.1
$region0: #{tpu_custom_call.1}
  #allocation0 [shape = 'u32[]', space=smem, size = 0x4, offset = 0x4, fixed_abs, tag = 'smem constant byte address 0x4 - core index']
  #allocation1 [shape = 'u32[72,128]{1,0:T(1,128)}', space=vmem, size = 0x9000, scoped, tag = 'internal scratch']
  %s0 = inlined_call_operand.hbm [shape: bf16[8,180], index: 0, kind: input, shape index: {}]
  %s1 = inlined_call_operand.hbm [shape: bf16[180,768], index: 1, kind: input, shape index: {}]
  %s2 = inlined_call_operand.hbm [shape: f32[8,256], index: 2, kind: output, shape index: {}]
  %s3 = sld [smem:[#allocation0]]
  $region26: #{tpu_custom_call.1} parent=0
    _
  %s5 = ssub.s32 1, %s3
  %s6 = scalar_select 0, %s5, %s3
  $region1: #{tpu_custom_call.1} parent=0
    #allocation2 [shape = 'u8[4096]{0}', space=vmem, size = 0x1000, scoped, tag = 'input window, operand 0, single buffered']
    #allocation3 [shape = 's32[1]{0}', space=sflag, size = 0x4, scoped, tag = 'scoped memory for tpu_custom_call.1']
    #allocation4 [shape = 's32[1]{0}', space=sflag, size = 0x4, scoped, tag = 'scoped memory for tpu_custom_call.1']
    #allocation5 [shape = 'u8[282624]{0}', space=vmem, size = 0x45000, scoped, tag = 'input window, operand 1, single buffered']
    #allocation6 [shape = 's32[1]{0}', space=sflag, size = 0x4, scoped, tag = 'scoped memory for tpu_custom_call.1']
    #allocation7 [shape = 'u8[8192]{0}', space=vmem, size = 0x2000, scoped, tag = 'output window, operand 0, single buffered']
    %7 = vsyncpa [#allocation3], 0
    %8 = vsyncpa [#allocation6], 0
    %9 = vsyncpa [#allocation4], 0
    // Predicated region
    $region2: #{tpu_custom_call.1} parent=1 // pred_check
      _
    $region3: #{tpu_custom_call.1} parent=1 // pred_check_branch
      %11 = sbr.rel (0) target = $region5
    $region4: #{tpu_custom_call.1} parent=1 // pred_region
      %13 = vsyncadd [#allocation3], 0
      %s15 = sshll.u32 %s0, 4
      %s16 = int_to_ptr.hbm [resolvable:$true] %s15
      %s17 = sshll.u32 [#allocation2], 4
      %s18 = int_to_ptr.vmem [resolvable:$true] %s17
      %20 = dma.hbm_to_vmem [thread:$0]  %s16, 128, %s18, [#allocation3]
    $region5: #{tpu_custom_call.1} parent=1 // pred_fallthru
      _
    // Predicated region
    $region6: #{tpu_custom_call.1} parent=1 // pred_check
      _
    $region7: #{tpu_custom_call.1} parent=1 // pred_check_branch
      %22 = sbr.rel (0) target = $region9
    $region8: #{tpu_custom_call.1} parent=1 // pred_region
      %24 = vsyncadd [#allocation6], 0
      %s25 = sshll.u32 %s1, 4
      %s26 = int_to_ptr.hbm [resolvable:$true] %s25
      %s27 = sshll.u32 [#allocation5], 4
      %s28 = int_to_ptr.vmem [resolvable:$true] %s27
      %33 = dma.hbm_to_vmem [thread:$0]  %s26, 8832, %s28, [#allocation6], 384, 384, 24
    $region9: #{tpu_custom_call.1} parent=1 // pred_fallthru
      _
    // Predicated region
    $region10: #{tpu_custom_call.1} parent=1 // pred_check
      _
    $region11: #{tpu_custom_call.1} parent=1 // pred_check_branch
      %35 = sbr.rel (0) target = $region13
    $region12: #{tpu_custom_call.1} parent=1 // pred_region
      %37 = dma.done [#allocation3], 128
    $region13: #{tpu_custom_call.1} parent=1 // pred_fallthru
      _
    // Predicated region
    $region14: #{tpu_custom_call.1} parent=1 // pred_check
      _
    $region15: #{tpu_custom_call.1} parent=1 // pred_check_branch
      %39 = sbr.rel (0) target = $region17
    $region16: #{tpu_custom_call.1} parent=1 // pred_region
      %41 = dma.done [#allocation6], 8832
    $region17: #{tpu_custom_call.1} parent=1 // pred_fallthru
      _
    %v43 = vld [vmem:[#allocation2] sm:$0xff]
    %v44 = vld [vmem:[#allocation5] sm:$0xff]
    %v45 = vld [vmem:[#allocation5 + $0x8] sm:$0xff]
    %v46 = vld [vmem:[#allocation5 + $0x10] sm:$0xff]
    %v47 = vld [vmem:[#allocation5 + $0x18] sm:$0xff]
    %v48 = vld [vmem:[#allocation5 + $0x20] sm:$0xff]
    %v49 = vld [vmem:[#allocation5 + $0x28] sm:$0xff]
    %v50 = vld [vmem:[#allocation5 + $0x30] sm:$0xff]
    %v51 = vld [vmem:[#allocation5 + $0x38] sm:$0xff]
    %v52 = vld [vmem:[#allocation5 + $0x40] sm:$0xff]
    %v53 = vld [vmem:[#allocation5 + $0x48] sm:$0xff]
    %v54 = vld [vmem:[#allocation5 + $0x50] sm:$0xff]
    %v55 = vld [vmem:[#allocation5 + $0x58] sm:$0xff]
    %v56 = vld [vmem:[#allocation5 + $0x60] sm:$0xff]
    %v57 = vld [vmem:[#allocation5 + $0x68] sm:$0xff]
    %v58 = vld [vmem:[#allocation5 + $0x70] sm:$0xff]
    %v59 = vld [vmem:[#allocation5 + $0x78] sm:$0xff]
    %v60 = vld [vmem:[#allocation5 + $0x80] sm:$0xff]
    %v61 = vld [vmem:[#allocation5 + $0x88] sm:$0xff]
    %v62 = vld [vmem:[#allocation5 + $0x90] sm:$0xff]
    %v63 = vld [vmem:[#allocation5 + $0x98] sm:$0xff]
    %v64 = vld [vmem:[#allocation5 + $0xa0] sm:$0xff]
    %v65 = vld [vmem:[#allocation5 + $0xa8] sm:$0xff]
    %v66 = vld [vmem:[#allocation5 + $0xb0] sm:$0xff]
    %v67 = vld [vmem:[#allocation5 + $0xb8] sm:$0xff]
    %v68 = vld [vmem:[#allocation5 + $0xc0] sm:$0xff]
    %v69 = vld [vmem:[#allocation5 + $0xc8] sm:$0xff]
    %v70 = vld [vmem:[#allocation5 + $0xd0] sm:$0xff]
    %v71 = vld [vmem:[#allocation5 + $0xd8] sm:$0xff]
    %v72 = vld [vmem:[#allocation5 + $0xe0] sm:$0xff]
    %v73 = vld [vmem:[#allocation5 + $0xe8] sm:$0xff]
    %v74 = vld [vmem:[#allocation5 + $0xf0] sm:$0xff]
    %v75 = vld [vmem:[#allocation5 + $0xf8] sm:$0xff]
    %v76 = vld [vmem:[#allocation5 + $0x100] sm:$0xff]
    %v77 = vld [vmem:[#allocation5 + $0x108] sm:$0xff]
    %v78 = vld [vmem:[#allocation5 + $0x110] sm:$0xff]
    %v79 = vld [vmem:[#allocation5 + $0x118] sm:$0xff]
    %v80 = vld [vmem:[#allocation5 + $0x120] sm:$0xff]
    %v81 = vld [vmem:[#allocation5 + $0x128] sm:$0xff]
    %v82 = vld [vmem:[#allocation5 + $0x130] sm:$0xff]
    %v83 = vld [vmem:[#allocation5 + $0x138] sm:$0xff]
    %v84 = vld [vmem:[#allocation5 + $0x140] sm:$0xff]
    %v85 = vld [vmem:[#allocation5 + $0x148] sm:$0xff]
    %v86 = vld [vmem:[#allocation5 + $0x150] sm:$0xff]
    %v87 = vld [vmem:[#allocation5 + $0x158] sm:$0xff]
    %v88 = vld [vmem:[#allocation5 + $0x160] sm:$0xff]
    %v89 = vld [vmem:[#allocation5 + $0x168] sm:$0xff]
    %v90 = vld [vmem:[#allocation5 + $0x170] sm:$0xff]
    %v91 = vld [vmem:[#allocation5 + $0x178] sm:$0xff]
    %v92 = vld [vmem:[#allocation5 + $0x180] sm:$0xff]
    %v93 = vld [vmem:[#allocation5 + $0x188] sm:$0xff]
    %v94 = vld [vmem:[#allocation5 + $0x190] sm:$0xff]
    %v95 = vld [vmem:[#allocation5 + $0x198] sm:$0xff]
    %v96 = vld [vmem:[#allocation5 + $0x1a0] sm:$0xff]
    %v97 = vld [vmem:[#allocation5 + $0x1a8] sm:$0xff]
    %v98 = vld [vmem:[#allocation5 + $0x1b0] sm:$0xff]
    %v99 = vld [vmem:[#allocation5 + $0x1b8] sm:$0xff]
    %v100 = vld [vmem:[#allocation5 + $0x1c0] sm:$0xff]
    %v101 = vld [vmem:[#allocation5 + $0x1c8] sm:$0xff]
    %v102 = vld [vmem:[#allocation5 + $0x1d0] sm:$0xff]
    %v103 = vld [vmem:[#allocation5 + $0x1d8] sm:$0xff]
    %v104 = vld [vmem:[#allocation5 + $0x1e0] sm:$0xff]
    %v105 = vld [vmem:[#allocation5 + $0x1e8] sm:$0xff]
    %v106 = vld [vmem:[#allocation5 + $0x1f0] sm:$0xff]
    %v107 = vld [vmem:[#allocation5 + $0x1f8] sm:$0xff]
    %v108 = vld [vmem:[#allocation5 + $0x200] sm:$0xff]
    %v109 = vld [vmem:[#allocation5 + $0x208] sm:$0xff]
    %v110 = vld [vmem:[#allocation5 + $0x210] sm:$0x33]
    %v111 = vld [vmem:[#allocation5 + $0x218] sm:$0x33]
    %v112 = vld [vmem:[#allocation5 + $0x220] sm:$0x33]
    %v114 = vunpack.c.l.b16 %v43
    %v115 = vunpack.c.h.b16 %v43
    %v116 = vpack.c.b16 %v114, %v114
    %v117 = vpack.c.b16 %v115, %v115
    %v188 = vunpack.c.l.b16 %v44
    %v189 = vunpack.c.h.b16 %v44
    %v190 = vunpack.c.l.b16 %v45
    %v191 = vunpack.c.h.b16 %v45
    %v192 = vunpack.c.l.b16 %v46
    %v193 = vunpack.c.h.b16 %v46
    %v194 = vunpack.c.l.b16 %v47
    %v195 = vunpack.c.h.b16 %v47
    %v196 = vunpack.c.l.b16 %v48
    %v197 = vunpack.c.h.b16 %v48
    %v198 = vunpack.c.l.b16 %v49
    %v199 = vunpack.c.h.b16 %v49
    %v200 = vunpack.c.l.b16 %v50
    %v201 = vunpack.c.h.b16 %v50
    %v202 = vunpack.c.l.b16 %v51
    %v203 = vunpack.c.h.b16 %v51
    %v204 = vunpack.c.l.b16 %v52
    %v205 = vunpack.c.h.b16 %v52
    %v206 = vunpack.c.l.b16 %v53
    %v207 = vunpack.c.h.b16 %v53
    %v208 = vunpack.c.l.b16 %v54
    %v209 = vunpack.c.h.b16 %v54
    %v210 = vunpack.c.l.b16 %v55
    %v211 = vunpack.c.h.b16 %v55
    %v212 = vunpack.c.l.b16 %v56
    %v213 = vunpack.c.h.b16 %v56
    %v214 = vunpack.c.l.b16 %v57
    %v215 = vunpack.c.h.b16 %v57
    %v216 = vunpack.c.l.b16 %v58
    %v217 = vunpack.c.h.b16 %v58
    %v218 = vunpack.c.l.b16 %v59
    %v219 = vunpack.c.h.b16 %v59
    %v220 = vunpack.c.l.b16 %v60
    %v221 = vunpack.c.h.b16 %v60
    %v222 = vunpack.c.l.b16 %v61
    %v223 = vunpack.c.h.b16 %v61
    %v224 = vunpack.c.l.b16 %v62
    %v225 = vunpack.c.h.b16 %v62
    %v226 = vunpack.c.l.b16 %v63
    %v227 = vunpack.c.h.b16 %v63
    %v228 = vunpack.c.l.b16 %v64
    %v229 = vunpack.c.h.b16 %v64
    %v230 = vunpack.c.l.b16 %v65
    %v231 = vunpack.c.h.b16 %v65
    %v232 = vunpack.c.l.b16 %v66
    %v233 = vunpack.c.h.b16 %v66
    %v234 = vunpack.c.l.b16 %v67
    %v235 = vunpack.c.h.b16 %v67
    %v236 = vunpack.c.l.b16 %v68
    %v237 = vunpack.c.h.b16 %v68
    %v238 = vunpack.c.l.b16 %v69
    %v239 = vunpack.c.h.b16 %v69
    %v240 = vunpack.c.l.b16 %v70
    %v241 = vunpack.c.h.b16 %v70
    %v242 = vunpack.c.l.b16 %v71
    %v243 = vunpack.c.h.b16 %v71
    %v244 = vunpack.c.l.b16 %v72
    %v245 = vunpack.c.h.b16 %v72
    %v246 = vunpack.c.l.b16 %v73
    %v247 = vunpack.c.h.b16 %v73
    %v248 = vunpack.c.l.b16 %v74
    %v249 = vunpack.c.h.b16 %v74
    %v250 = vunpack.c.l.b16 %v75
    %v251 = vunpack.c.h.b16 %v75
    %v252 = vunpack.c.l.b16 %v76
    %v253 = vunpack.c.h.b16 %v76
    %v254 = vunpack.c.l.b16 %v77
    %v255 = vunpack.c.h.b16 %v77
    %v256 = vunpack.c.l.b16 %v78
    %v257 = vunpack.c.h.b16 %v78
    %v258 = vunpack.c.l.b16 %v79
    %v259 = vunpack.c.h.b16 %v79
    %v260 = vunpack.c.l.b16 %v80
    %v261 = vunpack.c.h.b16 %v80
    %v262 = vunpack.c.l.b16 %v81
    %v263 = vunpack.c.h.b16 %v81
    %v264 = vunpack.c.l.b16 %v82
    %v265 = vunpack.c.h.b16 %v82
    %v266 = vunpack.c.l.b16 %v83
    %v267 = vunpack.c.h.b16 %v83
    %v268 = vunpack.c.l.b16 %v84
    %v269 = vunpack.c.h.b16 %v84
    %v270 = vunpack.c.l.b16 %v85
    %v271 = vunpack.c.h.b16 %v85
    %v272 = vunpack.c.l.b16 %v86
    %v273 = vunpack.c.h.b16 %v86
    %v274 = vunpack.c.l.b16 %v87
    %v275 = vunpack.c.h.b16 %v87
    %v276 = vunpack.c.l.b16 %v88
    %v277 = vunpack.c.h.b16 %v88
    %v278 = vunpack.c.l.b16 %v89
    %v279 = vunpack.c.h.b16 %v89
    %v280 = vunpack.c.l.b16 %v90
    %v281 = vunpack.c.h.b16 %v90
    %v282 = vunpack.c.l.b16 %v91
    %v283 = vunpack.c.h.b16 %v91
    %v284 = vunpack.c.l.b16 %v92
    %v285 = vunpack.c.h.b16 %v92
    %v286 = vunpack.c.l.b16 %v93
    %v287 = vunpack.c.h.b16 %v93
    %v288 = vunpack.c.l.b16 %v94
    %v289 = vunpack.c.h.b16 %v94
    %v290 = vunpack.c.l.b16 %v95
    %v291 = vunpack.c.h.b16 %v95
    %v292 = vunpack.c.l.b16 %v96
    %v293 = vunpack.c.h.b16 %v96
    %v294 = vunpack.c.l.b16 %v97
    %v295 = vunpack.c.h.b16 %v97
    %v296 = vunpack.c.l.b16 %v98
    %v297 = vunpack.c.h.b16 %v98
    %v298 = vunpack.c.l.b16 %v99
    %v299 = vunpack.c.h.b16 %v99
    %v300 = vunpack.c.l.b16 %v100
    %v301 = vunpack.c.h.b16 %v100
    %v302 = vunpack.c.l.b16 %v101
    %v303 = vunpack.c.h.b16 %v101
    %v304 = vunpack.c.l.b16 %v102
    %v305 = vunpack.c.h.b16 %v102
    %v306 = vunpack.c.l.b16 %v103
    %v307 = vunpack.c.h.b16 %v103
    %v308 = vunpack.c.l.b16 %v104
    %v309 = vunpack.c.h.b16 %v104
    %v310 = vunpack.c.l.b16 %v105
    %v311 = vunpack.c.h.b16 %v105
    %v312 = vunpack.c.l.b16 %v106
    %v313 = vunpack.c.h.b16 %v106
    %v314 = vunpack.c.l.b16 %v107
    %v315 = vunpack.c.h.b16 %v107
    %v316 = vunpack.c.l.b16 %v108
    %v317 = vunpack.c.h.b16 %v108
    %v318 = vunpack.c.l.b16 %v109
    %v319 = vunpack.c.h.b16 %v109
    %v320 = vunpack.c.l.b16 %v110
    %v321 = vunpack.c.h.b16 %v110
    %v322 = vunpack.c.l.b16 %v111
    %v323 = vunpack.c.h.b16 %v111
    %v324 = vunpack.c.l.b16 %v112
    %v325 = vunpack.c.h.b16 %v112
    %v326 = vpack.c.b16 %v194, %v188
    %v327 = vpack.c.b16 %v195, %v189
    %v328 = vpack.c.b16 %v196, %v190
    %v329 = vpack.c.b16 %v197, %v191
    %v330 = vpack.c.b16 %v198, %v192
    %v331 = vpack.c.b16 %v199, %v193
    %v332 = vpack.c.b16 %v206, %v200
    %v333 = vpack.c.b16 %v207, %v201
    %v334 = vpack.c.b16 %v208, %v202
    %v335 = vpack.c.b16 %v209, %v203
    %v336 = vpack.c.b16 %v210, %v204
    %v337 = vpack.c.b16 %v211, %v205
    %v338 = vpack.c.b16 %v218, %v212
    %v339 = vpack.c.b16 %v219, %v213
    %v340 = vpack.c.b16 %v220, %v214
    %v341 = vpack.c.b16 %v221, %v215
    %v342 = vpack.c.b16 %v222, %v216
    %v343 = vpack.c.b16 %v223, %v217
    %v344 = vpack.c.b16 %v230, %v224
    %v345 = vpack.c.b16 %v231, %v225
    %v346 = vpack.c.b16 %v232, %v226
    %v347 = vpack.c.b16 %v233, %v227
    %v348 = vpack.c.b16 %v234, %v228
    %v349 = vpack.c.b16 %v235, %v229
    %v350 = vpack.c.b16 %v242, %v236
    %v351 = vpack.c.b16 %v243, %v237
    %v352 = vpack.c.b16 %v244, %v238
    %v353 = vpack.c.b16 %v245, %v239
    %v354 = vpack.c.b16 %v246, %v240
    %v355 = vpack.c.b16 %v247, %v241
    %v356 = vpack.c.b16 %v254, %v248
    %v357 = vpack.c.b16 %v255, %v249
    %v358 = vpack.c.b16 %v256, %v250
    %v359 = vpack.c.b16 %v257, %v251
    %v360 = vpack.c.b16 %v258, %v252
    %v361 = vpack.c.b16 %v259, %v253
    %v362 = vpack.c.b16 %v266, %v260
    %v363 = vpack.c.b16 %v267, %v261
    %v364 = vpack.c.b16 %v268, %v262
    %v365 = vpack.c.b16 %v269, %v263
    %v366 = vpack.c.b16 %v270, %v264
    %v367 = vpack.c.b16 %v271, %v265
    %v368 = vpack.c.b16 %v278, %v272
    %v369 = vpack.c.b16 %v279, %v273
    %v370 = vpack.c.b16 %v280, %v274
    %v371 = vpack.c.b16 %v281, %v275
    %v372 = vpack.c.b16 %v282, %v276
    %v373 = vpack.c.b16 %v283, %v277
    %v374 = vpack.c.b16 %v290, %v284
    %v375 = vpack.c.b16 %v291, %v285
    %v376 = vpack.c.b16 %v292, %v286
    %v377 = vpack.c.b16 %v293, %v287
    %v378 = vpack.c.b16 %v294, %v288
    %v379 = vpack.c.b16 %v295, %v289
    %v380 = vpack.c.b16 %v302, %v296
    %v381 = vpack.c.b16 %v303, %v297
    %v382 = vpack.c.b16 %v304, %v298
    %v383 = vpack.c.b16 %v305, %v299
    %v384 = vpack.c.b16 %v306, %v300
    %v385 = vpack.c.b16 %v307, %v301
    %v386 = vpack.c.b16 %v314, %v308
    %v387 = vpack.c.b16 %v315, %v309
    %v388 = vpack.c.b16 %v316, %v310
    %v389 = vpack.c.b16 %v317, %v311
    %v390 = vpack.c.b16 %v318, %v312
    %v391 = vpack.c.b16 %v319, %v313
    %v392 = vpack.c.b16 %v320, %v320
    %v393 = vpack.c.b16 %v321, %v321
    %v394 = vpack.c.b16 %v322, %v322
    %v395 = vpack.c.b16 %v323, %v323
    %v396 = vpack.c.b16 %v324, %v324
    %v397 = vpack.c.b16 %v325, %v325
    %vm464 = vcmask 424960
    %v466 = vsel %vm464, %v117, 0
    %vm468 = vcmask 1041408
    %v470 = vsel %vm468, %v392, 0
    %v473 = vsel %vm468, %v393, 0
    %v476 = vsel %vm468, %v394, 0
    %v479 = vsel %vm468, %v395, 0
    %v482 = vsel %vm468, %v396, 0
    %v485 = vsel %vm468, %v397, 0
    %487 = vmatpush.bf16.msra.mxu0 %v368
    %488 = vmatpush.bf16.msra.mxu0 %v362
    %489 = vmatpush.bf16.msra.mxu0 %v356
    %490 = vmatpush.bf16.msra.mxu0 %v350
    %491 = vmatpush.bf16.msra.mxu0 %v344
    %492 = vmatpush.bf16.msra.mxu0 %v338
    %493 = vmatpush.bf16.msra.mxu0 %v332
    %494 = vmatpush.bf16.msra.mxu0 %v326
    %495 = vmatmul.bf16.gmra.mxu0 %v116
    %v496 = vpop.f32.mrf.mxu0
    %v497 = vadd.f32 0.0, %v496
    %v498 = vpop.f32.mrf.mxu0
    %499 = vdwg.mxu0
    %500 = vmatpush.bf16.msra.mxu0 0
    %501 = vmatpush.bf16.msra.mxu0 0
    %502 = vmatpush.bf16.msra.mxu0 0
    %503 = vmatpush.bf16.msra.mxu0 0
    %504 = vmatpush.bf16.msra.mxu0 %v470
    %505 = vmatpush.bf16.msra.mxu0 %v386
    %506 = vmatpush.bf16.msra.mxu0 %v380
    %507 = vmatpush.bf16.msra.mxu0 %v374
    %508 = vmatmul.bf16.gmra.mxu0 %v466
    %v509 = vpop.f32.mrf.mxu0
    %v510 = vadd.f32 %v497, %v509
    %v511 = vpop.f32.mrf.mxu0
    %512 = vdwg.mxu0
    %513 = vmatpush.bf16.msra.mxu0 %v369
    %514 = vmatpush.bf16.msra.mxu0 %v363
    %515 = vmatpush.bf16.msra.mxu0 %v357
    %516 = vmatpush.bf16.msra.mxu0 %v351
    %517 = vmatpush.bf16.msra.mxu0 %v345
    %518 = vmatpush.bf16.msra.mxu0 %v339
    %519 = vmatpush.bf16.msra.mxu0 %v333
    %520 = vmatpush.bf16.msra.mxu0 %v327
    %521 = vmatmul.bf16.gmra.mxu0 %v116
    %v522 = vpop.f32.mrf.mxu0
    %v523 = vadd.f32 0.0, %v522
    %v524 = vpop.f32.mrf.mxu0
    %525 = vdwg.mxu0
    %526 = vmatpush.bf16.msra.mxu0 0
    %527 = vmatpush.bf16.msra.mxu0 0
    %528 = vmatpush.bf16.msra.mxu0 0
    %529 = vmatpush.bf16.msra.mxu0 0
    %530 = vmatpush.bf16.msra.mxu0 %v473
    %531 = vmatpush.bf16.msra.mxu0 %v387
    %532 = vmatpush.bf16.msra.mxu0 %v381
    %533 = vmatpush.bf16.msra.mxu0 %v375
    %534 = vmatmul.bf16.gmra.mxu0 %v466
    %v535 = vpop.f32.mrf.mxu0
    %v536 = vadd.f32 %v523, %v535
    %v537 = vpop.f32.mrf.mxu0
    %538 = vdwg.mxu0
    %539 = vmatpush.bf16.msra.mxu0 %v370
    %540 = vmatpush.bf16.msra.mxu0 %v364
    %541 = vmatpush.bf16.msra.mxu0 %v358
    %542 = vmatpush.bf16.msra.mxu0 %v352
    %543 = vmatpush.bf16.msra.mxu0 %v346
    %544 = vmatpush.bf16.msra.mxu0 %v340
    %545 = vmatpush.bf16.msra.mxu0 %v334
    %546 = vmatpush.bf16.msra.mxu0 %v328
    %547 = vmatmul.bf16.gmra.mxu0 %v116
    %v548 = vpop.f32.mrf.mxu0
    %v549 = vadd.f32 0.0, %v548
    %v550 = vpop.f32.mrf.mxu0
    %551 = vdwg.mxu0
    %552 = vmatpush.bf16.msra.mxu0 0
    %553 = vmatpush.bf16.msra.mxu0 0
    %554 = vmatpush.bf16.msra.mxu0 0
    %555 = vmatpush.bf16.msra.mxu0 0
    %556 = vmatpush.bf16.msra.mxu0 %v476
    %557 = vmatpush.bf16.msra.mxu0 %v388
    %558 = vmatpush.bf16.msra.mxu0 %v382
    %559 = vmatpush.bf16.msra.mxu0 %v376
    %560 = vmatmul.bf16.gmra.mxu0 %v466
    %v561 = vpop.f32.mrf.mxu0
    %v562 = vadd.f32 %v549, %v561
    %v563 = vpop.f32.mrf.mxu0
    %564 = vdwg.mxu0
    %565 = vmatpush.bf16.msra.mxu0 %v371
    %566 = vmatpush.bf16.msra.mxu0 %v365
    %567 = vmatpush.bf16.msra.mxu0 %v359
    %568 = vmatpush.bf16.msra.mxu0 %v353
    %569 = vmatpush.bf16.msra.mxu0 %v347
    %570 = vmatpush.bf16.msra.mxu0 %v341
    %571 = vmatpush.bf16.msra.mxu0 %v335
    %572 = vmatpush.bf16.msra.mxu0 %v329
    %573 = vmatmul.bf16.gmra.mxu0 %v116
    %v574 = vpop.f32.mrf.mxu0
    %v575 = vadd.f32 0.0, %v574
    %v576 = vpop.f32.mrf.mxu0
    %577 = vdwg.mxu0
    %578 = vmatpush.bf16.msra.mxu0 0
    %579 = vmatpush.bf16.msra.mxu0 0
    %580 = vmatpush.bf16.msra.mxu0 0
    %581 = vmatpush.bf16.msra.mxu0 0
    %582 = vmatpush.bf16.msra.mxu0 %v479
    %583 = vmatpush.bf16.msra.mxu0 %v389
    %584 = vmatpush.bf16.msra.mxu0 %v383
    %585 = vmatpush.bf16.msra.mxu0 %v377
    %586 = vmatmul.bf16.gmra.mxu0 %v466
    %v587 = vpop.f32.mrf.mxu0
    %v588 = vadd.f32 %v575, %v587
    %v589 = vpop.f32.mrf.mxu0
    %590 = vdwg.mxu0
    %591 = vmatpush.bf16.msra.mxu0 %v372
    %592 = vmatpush.bf16.msra.mxu0 %v366
    %593 = vmatpush.bf16.msra.mxu0 %v360
    %594 = vmatpush.bf16.msra.mxu0 %v354
    %595 = vmatpush.bf16.msra.mxu0 %v348
    %596 = vmatpush.bf16.msra.mxu0 %v342
    %597 = vmatpush.bf16.msra.mxu0 %v336
    %598 = vmatpush.bf16.msra.mxu0 %v330
    %599 = vmatmul.bf16.gmra.mxu0 %v116
    %v600 = vpop.f32.mrf.mxu0
    %v601 = vadd.f32 0.0, %v600
    %v602 = vpop.f32.mrf.mxu0
    %603 = vdwg.mxu0
    %604 = vmatpush.bf16.msra.mxu0 0
    %605 = vmatpush.bf16.msra.mxu0 0
    %606 = vmatpush.bf16.msra.mxu0 0
    %607 = vmatpush.bf16.msra.mxu0 0
    %608 = vmatpush.bf16.msra.mxu0 %v482
    %609 = vmatpush.bf16.msra.mxu0 %v390
    %610 = vmatpush.bf16.msra.mxu0 %v384
    %611 = vmatpush.bf16.msra.mxu0 %v378
    %612 = vmatmul.bf16.gmra.mxu0 %v466
    %v613 = vpop.f32.mrf.mxu0
    %v614 = vadd.f32 %v601, %v613
    %v615 = vpop.f32.mrf.mxu0
    %616 = vdwg.mxu0
    %617 = vmatpush.bf16.msra.mxu0 %v373
    %618 = vmatpush.bf16.msra.mxu0 %v367
    %619 = vmatpush.bf16.msra.mxu0 %v361
    %620 = vmatpush.bf16.msra.mxu0 %v355
    %621 = vmatpush.bf16.msra.mxu0 %v349
    %622 = vmatpush.bf16.msra.mxu0 %v343
    %623 = vmatpush.bf16.msra.mxu0 %v337
    %624 = vmatpush.bf16.msra.mxu0 %v331
    %625 = vmatmul.bf16.gmra.mxu0 %v116
    %v626 = vpop.f32.mrf.mxu0
    %v627 = vadd.f32 0.0, %v626
    %v628 = vpop.f32.mrf.mxu0
    %629 = vdwg.mxu0
    %630 = vmatpush.bf16.msra.mxu0 0
    %631 = vmatpush.bf16.msra.mxu0 0
    %632 = vmatpush.bf16.msra.mxu0 0
    %633 = vmatpush.bf16.msra.mxu0 0
    %634 = vmatpush.bf16.msra.mxu0 %v485
    %635 = vmatpush.bf16.msra.mxu0 %v391
    %636 = vmatpush.bf16.msra.mxu0 %v385
    %637 = vmatpush.bf16.msra.mxu0 %v379
    %638 = vmatmul.bf16.gmra.mxu0 %v466
    %v639 = vpop.f32.mrf.mxu0
    %v640 = vadd.f32 %v627, %v639
    %v641 = vpop.f32.mrf.mxu0
    %642 = vdwg.mxu0
    %643 = vmatpush.xpose.msra.mxu0 0.0
    %644 = vmatpush.xpose.msra.mxu0 0.0
    %645 = vmatpush.xpose.msra.mxu0 0.0
    %646 = vmatpush.xpose.msra.mxu0 0.0
    %647 = vmatpush.xpose.msra.mxu0 0.0
    %648 = vmatpush.xpose.msra.mxu0 0.0
    %649 = vmatpush.xpose.msra.mxu0 0.0
    %650 = vmatpush.xpose.msra.mxu0 0.0
    %651 = vmatpush.xpose.msra.mxu0 0.0
    %652 = vmatpush.xpose.msra.mxu0 0.0
    %653 = vmatpush.xpose.msra.mxu0 0.0
    %654 = vmatpush.xpose.msra.mxu0 0.0
    %655 = vmatpush.xpose.msra.mxu0 0.0
    %656 = vmatpush.xpose.msra.mxu0 0.0
    %657 = vmatpush.xpose.msra.mxu0 0.0
    %658 = vmatpush.xpose.msra.mxu0 %v562
    %659 = vmatmul.f32.gmra.mxu0 %v510
    %v660 = vpop.f32.mrf.mxu0
    %v661 = vadd.f32 0.0, %v660
    %662 = vdwg.mxu0
    %663 = vmatpush.xpose.msra.mxu0 0.0
    %664 = vmatpush.xpose.msra.mxu0 0.0
    %665 = vmatpush.xpose.msra.mxu0 0.0
    %666 = vmatpush.xpose.msra.mxu0 0.0
    %667 = vmatpush.xpose.msra.mxu0 0.0
    %668 = vmatpush.xpose.msra.mxu0 0.0
    %669 = vmatpush.xpose.msra.mxu0 0.0
    %670 = vmatpush.xpose.msra.mxu0 0.0
    %671 = vmatpush.xpose.msra.mxu0 0.0
    %672 = vmatpush.xpose.msra.mxu0 0.0
    %673 = vmatpush.xpose.msra.mxu0 0.0
    %674 = vmatpush.xpose.msra.mxu0 0.0
    %675 = vmatpush.xpose.msra.mxu0 0.0
    %676 = vmatpush.xpose.msra.mxu0 0.0
    %677 = vmatpush.xpose.msra.mxu0 0.0
    %678 = vmatpush.xpose.msra.mxu0 %v588
    %679 = vmatmul.f32.gmra.mxu0 %v536
    %v680 = vpop.f32.mrf.mxu0
    %v681 = vadd.f32 %v661, %v680
    %682 = vdwg.mxu0
    %vm683 = vcmask 64512
    %v684 = vsel %vm683, %v681, -inf
    %685 = vmax.xlane.f32.xlu0 %v684
    %v686 = vpop.xlane.xlu0 %685
    %v687 = vsub.f32 %v681, %v686
    %v688 = vmul.f32 %v687, 1.442695
    %v689 = vpow.pop %v688
    %v690 = vsel %vm683, %v689, 0.0
    %691 = vadd.xlane.f32.xlu0 %v690
    %v692 = vpop.xlane.xlu0 %691
    %v693 = vrcp.pop %v692
    %v694 = vmul.f32 %v692, %v693
    %v695 = vsub.f32 1.0, %v694
    %v696 = vmul.f32 %v693, %v695
    %v697 = vadd.f32 %v693, %v696
    %vm698 = vweird.f32 %v692
    %vm699 = vweird.f32 %v693
    %vm700 = vmor %vm698, %vm699
    %v701 = vsel %vm700, %v693, %v697
    %v702 = vand.u32 2147483647, %v692
    %vm703 = vcmp.eq.f32.partialorder %v702, 8.507059e+37
    %v704 = vand.u32 %v692, 2147483648
    %v705 = vor.u32 1.1754944e-38, %v704
    %v706 = vsel %vm703, %v705, %v701
    %v707 = vmul.f32 %v689, %v706
    %v708 = vpack.c.bf16 %v707, %v707
    %v709 = vpack.c.bf16 %v614, %v614
    %v710 = vpack.c.bf16 %v640, %v640
    %v712 = vsel %vm683, %v708, 0
    %vm714 = vcmask 1043456
    %v716 = vsel %vm714, %v709, 0
    %v719 = vsel %vm714, %v710, 0
    %721 = vmatpush.bf16.msra.mxu0 0
    %722 = vmatpush.bf16.msra.mxu0 0
    %723 = vmatpush.bf16.msra.mxu0 0
    %724 = vmatpush.bf16.msra.mxu0 0
    %725 = vmatpush.bf16.msra.mxu0 0
    %726 = vmatpush.bf16.msra.mxu0 0
    %727 = vmatpush.bf16.msra.mxu0 0
    %728 = vmatpush.bf16.msra.mxu0 %v716
    %729 = vmatmul.bf16.gmra.mxu0 %v712
    %v730 = vpop.f32.mrf.mxu0
    %v731 = vadd.f32 0.0, %v730
    %v732 = vpop.f32.mrf.mxu0
    %733 = vdwg.mxu0
    %734 = vmatpush.bf16.msra.mxu0 0
    %735 = vmatpush.bf16.msra.mxu0 0
    %736 = vmatpush.bf16.msra.mxu0 0
    %737 = vmatpush.bf16.msra.mxu0 0
    %738 = vmatpush.bf16.msra.mxu0 0
    %739 = vmatpush.bf16.msra.mxu0 0
    %740 = vmatpush.bf16.msra.mxu0 0
    %741 = vmatpush.bf16.msra.mxu0 %v719
    %742 = vmatmul.bf16.gmra.mxu0 %v712
    %v743 = vpop.f32.mrf.mxu0
    %v744 = vadd.f32 0.0, %v743
    %v745 = vpop.f32.mrf.mxu0
    %746 = vdwg.mxu0
    %747 = vst [vmem:[#allocation7] sm:$0xff] %v731
    %748 = vst [vmem:[#allocation7 + $0x8] sm:$0xff] %v744
    // Predicated region
    $region18: #{tpu_custom_call.1} parent=1 // pred_check
      _
    $region19: #{tpu_custom_call.1} parent=1 // pred_check_branch
      %750 = sbr.rel (0) target = $region21
    $region20: #{tpu_custom_call.1} parent=1 // pred_region
      %752 = vsyncadd [#allocation4], 0
      %s754 = sshll.u32 [#allocation7], 4
      %s755 = int_to_ptr.vmem [resolvable:$true] %s754
      %s756 = sshll.u32 %s2, 4
      %s757 = int_to_ptr.hbm [resolvable:$true] %s756
      %759 = dma.vmem_to_hbm [thread:$0]  %s755, 256, %s757, [#allocation4]
    $region21: #{tpu_custom_call.1} parent=1 // pred_fallthru
      _
    // Predicated region
    $region22: #{tpu_custom_call.1} parent=1 // pred_check
      _
    $region23: #{tpu_custom_call.1} parent=1 // pred_check_branch
      %761 = sbr.rel (0) target = $region25
    $region24: #{tpu_custom_call.1} parent=1 // pred_region
      %763 = dma.done [#allocation4], 256
    $region25: #{tpu_custom_call.1} parent=1 // pred_fallthru
      _
    %764 = vsyncpa [#allocation3], 1
    %765 = vsyncpa [#allocation6], 1
    %766 = vsyncpa [#allocation4], 1

</llo_original>
